<compile_context>
chip_gen: v7x
topology: tpu7x:2x2x1
jax: 0.10.0
libtpu: 0.0.40
codegen_flags: <defaults>
</compile_context>

<pallas_src>
import functools

import jax
import jax.numpy as jnp
from jax.experimental import pallas as pl
from jax.experimental.pallas import tpu as pltpu


def _vfl_kernel(pred_ref, target_ref, out_ref, *, alpha, gamma,
                iou_weighted, use_sigmoid):
    # One (tm, C) tile; purely elementwise.  Cast to f32 on the VMEM tile so
    # narrow-dtype inputs keep their reduced HBM traffic.
    x = pred_ref[...].astype(jnp.float32)
    t = target_ref[...].astype(jnp.float32)

    # Stable BCE-with-logits term: log(1 + exp(-|x|)).
    e = jnp.exp(-jnp.abs(x))

    if use_sigmoid:
        # sigmoid(x) == 0.5 + 0.5*tanh(0.5*x): single EUP op, no divide/select.
        p = 0.5 + 0.5 * jnp.tanh(0.5 * x)
    else:
        p = x

    d = jnp.abs(p - t)
    g = float(gamma)
    if g == 2.0:
        mod = d * d                       # VPU only, no transcendentals
    elif g == int(g) and g >= 1.0:
        mod = d                           # gamma-1 multiplies, no ones_like
        for _ in range(int(g) - 1):
            mod = mod * d
    elif g == 0.0:
        mod = jnp.ones_like(d)
    else:
        mod = d ** g                      # true non-integer gamma only

    if iou_weighted:
        focal_weight = jnp.where(t > 0.0, t, alpha * mod)
    else:
        focal_weight = jnp.where(t > 0.0, 1.0, alpha * mod)

    # binary_cross_entropy_with_logits(x, t, reduction='none'), stable form:
    #   max(x, 0) - x*t + log(1 + exp(-|x|))
    bce = jnp.maximum(x, 0.0) - x * t + jnp.log1p(e)

    out_ref[...] = (bce * focal_weight).astype(out_ref.dtype)


def _round_up(v, m):
    return ((v + m - 1) // m) * m


def varifocal_loss_pallas(pred, target, *, alpha=0.75, gamma=2.0,
                          iou_weighted=True, use_sigmoid=True):
    assert pred.shape == target.shape
    orig_shape = pred.shape

    if pred.ndim == 0 or pred.size == 0:
        # Degenerate shapes: trivial jnp fallback (no kernel launch needed).
        x = pred.astype(jnp.float32)
        t = target.astype(jnp.float32)
        p = jax.nn.sigmoid(x) if use_sigmoid else x
        pos_val = t if iou_weighted else jnp.ones_like(t)
        fw = jnp.where(t > 0.0, pos_val, alpha * jnp.abs(p - t) ** gamma)
        return (jnp.maximum(x, 0.0) - x * t
                + jnp.log1p(jnp.exp(-jnp.abs(x)))) * fw

    # View as (rows, C).  For the spec'd (N, C) input this is a no-op (no copy,
    # no relayout); higher-rank inputs merge their leading dims.
    if pred.ndim == 1:
        p2, t2 = pred[None, :], target[None, :]
    elif pred.ndim == 2:
        p2, t2 = pred, target
    else:
        c_last = orig_shape[-1]
        p2, t2 = pred.reshape(-1, c_last), target.reshape(-1, c_last)
    rows, C = p2.shape

    # Row-tile selection:
    #  * ~512K f32 elements per operand block (~2 MiB) -> ~12 MiB double-buffered
    #    footprint across 3 operands, safe under the 32 MiB scoped-VMEM request.
    #  * at least ~4 grid steps when the input allows it, so the "parallel"
    #    grid axis can shard across v7x's two TensorCores and the DMA pipeline
    #    has iterations to overlap.
    rows_aligned = _round_up(rows, 8)
    tm_vmem = max(8, ((512 * 1024) // max(C, 1)) // 8 * 8)
    tm_para = max(8, _round_up(pl.cdiv(rows, 4), 8))
    tm = min(rows_aligned, tm_vmem, tm_para)
    grid = pl.cdiv(rows, tm)

    kernel = functools.partial(
        _vfl_kernel,
        alpha=float(alpha),
        gamma=float(gamma),
        iou_weighted=bool(iou_weighted),
        use_sigmoid=bool(use_sigmoid),
    )

    out2 = pl.pallas_call(
        kernel,
        out_shape=jax.ShapeDtypeStruct((rows, C), jnp.float32),
        grid_spec=pltpu.PrefetchScalarGridSpec(
            num_scalar_prefetch=0,
            grid=(grid,),
            in_specs=[
                pl.BlockSpec((tm, C), lambda i: (i, 0)),
                pl.BlockSpec((tm, C), lambda i: (i, 0)),
            ],
            out_specs=pl.BlockSpec((tm, C), lambda i: (i, 0)),
        ),
        compiler_params=pltpu.CompilerParams(
            dimension_semantics=("parallel",),      # shards across v7x's 2 TCs
            vmem_limit_bytes=32 * 1024 * 1024,      # safe on v5e/v6e/v7x
        ),
    )(p2, t2)

    # TODO(synk): if callers only ever consume sum()/mean() of this loss, a
    # fused in-kernel reduction would remove the 4 B/elem output stream.
    return out2 if out2.shape == orig_shape else out2.reshape(orig_shape)


class VarifocalLoss:
    """JAX/Pallas port of the PyTorch VarifocalLoss module (no parameters)."""

    def __init__(self, use_sigmoid=True, alpha=0.75, gamma=2.0,
                 iou_weighted=True):
        assert alpha >= 0.0
        self.use_sigmoid = use_sigmoid
        self.alpha = alpha
        self.gamma = gamma
        self.iou_weighted = iou_weighted

    def __call__(self, pred, target):
        return varifocal_loss_pallas(
            pred, target,
            alpha=self.alpha, gamma=self.gamma,
            iou_weighted=self.iou_weighted, use_sigmoid=self.use_sigmoid)


def _reference(pred, target, alpha=0.75, gamma=2.0, iou_weighted=True,
               use_sigmoid=True):
    x = pred.astype(jnp.float32)
    t = target.astype(jnp.float32)
    p = jax.nn.sigmoid(x) if use_sigmoid else x
    pos = (t > 0.0).astype(jnp.float32)
    neg = (t <= 0.0).astype(jnp.float32)
    if iou_weighted:
        fw = t * pos + alpha * jnp.abs(p - t) ** gamma * neg
    else:
        fw = pos + alpha * jnp.abs(p - t) ** gamma * neg
    bce = jnp.maximum(x, 0.0) - x * t + jnp.log1p(jnp.exp(-jnp.abs(x)))
    return bce * fw


if __name__ == "__main__":
    key = jax.random.PRNGKey(0)
    k1, k2, k3 = jax.random.split(key, 3)

    # Small, deliberately non-(8,128)-aligned shape: 100 predictions x 80 classes.
    N, C = 100, 80
    pred = jax.random.normal(k1, (N, C), dtype=jnp.float32) * 2.0
    # target: iou-aware classification score in [0, 1], mostly zeros (negatives)
    iou = jax.random.uniform(k2, (N, C), dtype=jnp.float32)
    mask = (jax.random.uniform(k3, (N, C)) < 0.1).astype(jnp.float32)
    target = iou * mask

    loss_fn = VarifocalLoss(use_sigmoid=True, alpha=0.75, gamma=2.0,
                            iou_weighted=True)
    out = loss_fn(pred, target)
    jax.block_until_ready(out)

    ref = _reference(pred, target)
    assert out.shape == (N, C)
    assert jnp.allclose(out, ref, atol=1e-5, rtol=1e-5), "mismatch vs reference"

    # Non-iou-weighted branch.
    out2 = VarifocalLoss(use_sigmoid=True, alpha=0.75, gamma=2.0,
                         iou_weighted=False)(pred, target)
    jax.block_until_ready(out2)
    ref2 = _reference(pred, target, iou_weighted=False)
    assert jnp.allclose(out2, ref2, atol=1e-5, rtol=1e-5), \
        "mismatch (iou_weighted=False)"

    # Native bf16 inputs: cast to f32 happens inside the kernel; compare against
    # the f32 reference evaluated on the same bf16-rounded values.
    pred_bf = pred.astype(jnp.bfloat16)
    target_bf = target.astype(jnp.bfloat16)
    out3 = loss_fn(pred_bf, target_bf)
    jax.block_until_ready(out3)
    ref3 = _reference(pred_bf.astype(jnp.float32),
                      target_bf.astype(jnp.float32))
    assert out3.dtype == jnp.float32
    assert jnp.allclose(out3, ref3, atol=1e-5, rtol=1e-5), \
        "mismatch (bf16 inputs)"

    print("KERNEL_OK")
</pallas_src>

<mosaic_0001>
module attributes {stable_mosaic.version = 11 : i64} {
  func.func @_vfl_kernel(%arg0: i32, %arg1: memref<32x80xf32, #tpu.memory_space<vmem>>, %arg2: memref<32x80xf32, #tpu.memory_space<vmem>>, %arg3: memref<32x80xf32, #tpu.memory_space<vmem>>) attributes {dimension_semantics = [#tpu.dimension_semantics<parallel>], iteration_bounds = array<i64: 4>, scalar_prefetch = 0 : i64, scratch_operands = 0 : i64, tpu.core_type = #tpu.core_type<tc>, window_params = [{transform_indices = @transform_0, window_bounds = array<i64: 32, 80>}, {transform_indices = @transform_1, window_bounds = array<i64: 32, 80>}, {transform_indices = @transform_2, window_bounds = array<i64: 32, 80>}]} {
    %c0 = arith.constant 0 : index
    %c0_0 = arith.constant 0 : index
    %0 = vector.load %arg1[%c0, %c0_0] : memref<32x80xf32, #tpu.memory_space<vmem>>, vector<32x80xf32>
    %c0_1 = arith.constant 0 : index
    %c0_2 = arith.constant 0 : index
    %1 = vector.load %arg2[%c0_1, %c0_2] : memref<32x80xf32, #tpu.memory_space<vmem>>, vector<32x80xf32>
    %2 = math.absf %0 : vector<32x80xf32>
    %cst = arith.constant 0.000000e+00 : f32
    %3 = vector.broadcast %cst : f32 to vector<32x80xf32>
    %4 = arith.subf %3, %2 : vector<32x80xf32>
    %5 = math.exp %4 : vector<32x80xf32>
    %cst_3 = arith.constant 5.000000e-01 : f32
    %6 = vector.broadcast %cst_3 : f32 to vector<32x80xf32>
    %7 = arith.mulf %6, %0 : vector<32x80xf32>
    %8 = math.tanh %7 : vector<32x80xf32>
    %cst_4 = arith.constant 5.000000e-01 : f32
    %9 = vector.broadcast %cst_4 : f32 to vector<32x80xf32>
    %10 = arith.mulf %9, %8 : vector<32x80xf32>
    %cst_5 = arith.constant 5.000000e-01 : f32
    %11 = vector.broadcast %cst_5 : f32 to vector<32x80xf32>
    %12 = arith.addf %11, %10 : vector<32x80xf32>
    %13 = arith.subf %12, %1 : vector<32x80xf32>
    %14 = math.absf %13 : vector<32x80xf32>
    %15 = arith.mulf %14, %14 : vector<32x80xf32>
    %cst_6 = arith.constant 0.000000e+00 : f32
    %16 = vector.broadcast %cst_6 : f32 to vector<32x80xf32>
    %17 = arith.cmpf ogt, %1, %16 : vector<32x80xf32>
    %cst_7 = arith.constant 7.500000e-01 : f32
    %18 = vector.broadcast %cst_7 : f32 to vector<32x80xf32>
    %19 = arith.mulf %18, %15 : vector<32x80xf32>
    %20 = arith.select %17, %1, %19 : vector<32x80xi1>, vector<32x80xf32>
    %cst_8 = arith.constant 0.000000e+00 : f32
    %21 = vector.broadcast %cst_8 : f32 to vector<32x80xf32>
    %22 = arith.maximumf %0, %21 : vector<32x80xf32>
    %23 = arith.mulf %0, %1 : vector<32x80xf32>
    %24 = arith.subf %22, %23 : vector<32x80xf32>
    %25 = math.log1p %5 : vector<32x80xf32>
    %26 = arith.addf %24, %25 : vector<32x80xf32>
    %27 = arith.mulf %26, %20 : vector<32x80xf32>
    %c0_9 = arith.constant 0 : index
    %c0_10 = arith.constant 0 : index
    %28 = vector.load %arg3[%c0_9, %c0_10] : memref<32x80xf32, #tpu.memory_space<vmem>>, vector<32x80xf32>
    tpu.vector_store %arg3[%c0_9, %c0_10], %27 {strides = array<i32>} : memref<32x80xf32, #tpu.memory_space<vmem>>, vector<32x80xf32>,
    return
  }
  func.func @transform_0(%arg0: i32) -> (i32, i32) {
    %c0_i32 = arith.constant 0 : i32
    %c0_i32_0 = arith.constant 0 : i32
    return %arg0, %c0_i32 : i32, i32
  }
  func.func @transform_1(%arg0: i32) -> (i32, i32) {
    %c0_i32 = arith.constant 0 : i32
    %c0_i32_0 = arith.constant 0 : i32
    return %arg0, %c0_i32 : i32, i32
  }
  func.func @transform_2(%arg0: i32) -> (i32, i32) {
    %c0_i32 = arith.constant 0 : i32
    %c0_i32_0 = arith.constant 0 : i32
    return %arg0, %c0_i32 : i32, i32
  }
}

</mosaic_0001>

<llo_original>
// kernel: tpu_custom_call.1
$region0: #{tpu_custom_call.1}
  #allocation0 [shape = 'u32[]', space=smem, size = 0x4, offset = 0x4, fixed_abs, tag = 'smem constant byte address 0x4 - core index']
  #allocation1 [shape = 'u32[144,128]{1,0:T(1,128)}', space=vmem, size = 0x12000, scoped, tag = 'internal scratch']
  %s0 = inlined_call_operand.vmem [shape: f32[100,80], index: 0, kind: input, shape index: {}]
  %s1 = inlined_call_operand.vmem [shape: f32[100,80], index: 1, kind: input, shape index: {}]
  %s2 = inlined_call_operand.vmem [shape: f32[100,80], index: 2, kind: output, shape index: {}]
  %s3 = sld [smem:[#allocation0]]
  $region89: #{tpu_custom_call.1} parent=0
    _
  %s5 = ssub.s32 1, %s3
  %s6 = scalar_select 0, %s5, %s3
  $region1: #{tpu_custom_call.1} parent=0
    #allocation2 [shape = 'u8[32768]{0}', space=vmem, size = 0x8000, scoped, tag = 'output window, operand 0']
    loop: start=0, step=1, limit=6
    $region2: #{tpu_custom_call.1} parent=1 // loop_pre_header
      _
    $region3: #{tpu_custom_call.1} parent=1 // loop_header
      %s8 = sphi 0, %s12
      %p9 = scmp.ge.s32.totalorder %s8, 6
      %s18 = sphi 0, %s20
      %s21 = sphi 0, %s18
      %s22 = sphi 0, %s21
      %s38 = sphi 0, %s22
      %s44 = sphi 0, %s46
      %s47 = sphi 0, %s44
      %s48 = sphi 0, %s47
      %s64 = sphi 0, %s48
      %s70 = sphi 0, %s72
      %s73 = sphi 0, %s70
      %s74 = sphi 0, %s73
      %s90 = sphi 0, %s74
    $region4: #{tpu_custom_call.1} parent=1 // loop_header_branch
      %11 = sbr.rel (%p9) target = $region8
    $region5: #{tpu_custom_call.1} parent=1 // loop_body
      %s13 = ssub.s32 %s8, 1
      %s14 = ssub.s32 %s8, 2
      %s15 = sadd.s32 %s8, 1
      %s16 = ssub.s32 %s8, %s15
      %p17 = scmp.eq.s32.totalorder %s16, 0
      %s19 = sadd.s32 %s18, 1
      %s20 = scalar_select %p17, %s18, %s19
      %p23 = pneg %p17
      %p24 = scmp.eq.s32.totalorder %s8, 3
      %p25 = por %p23, %p24
      %p26 = scmp.ne.s32.totalorder %s18, %s21
      %p27 = scmp.eq.s32.totalorder %s8, 0
      %p28 = por %p26, %p27
      %p29 = scmp.ne.s32.totalorder %s18, %s21
      %p30 = scmp.eq.s32.totalorder %s13, 3
      %p31 = por %p29, %p30
      %p32 = scmp.ne.s32.totalorder %s21, %s22
      %p33 = scmp.eq.s32.totalorder %s13, 0
      %p34 = por %p32, %p33
      %p35 = scmp.ne.s32.totalorder %s21, %s22
      %p36 = scmp.eq.s32.totalorder %s14, 3
      %p37 = por %p35, %p36
      %p39 = scmp.ne.s32.totalorder %s22, %s38
      %p40 = scmp.eq.s32.totalorder %s14, 0
      %p41 = por %p39, %p40
      %s42 = ssub.s32 %s8, %s15
      %p43 = scmp.eq.s32.totalorder %s42, 0
      %s45 = sadd.s32 %s44, 1
      %s46 = scalar_select %p43, %s44, %s45
      %p49 = pneg %p43
      %p50 = scmp.eq.s32.totalorder %s8, 3
      %p51 = por %p49, %p50
      %p52 = scmp.ne.s32.totalorder %s44, %s47
      %p53 = scmp.eq.s32.totalorder %s8, 0
      %p54 = por %p52, %p53
      %p55 = scmp.ne.s32.totalorder %s44, %s47
      %p56 = scmp.eq.s32.totalorder %s13, 3
      %p57 = por %p55, %p56
      %p58 = scmp.ne.s32.totalorder %s47, %s48
      %p59 = scmp.eq.s32.totalorder %s13, 0
      %p60 = por %p58, %p59
      %p61 = scmp.ne.s32.totalorder %s47, %s48
      %p62 = scmp.eq.s32.totalorder %s14, 3
      %p63 = por %p61, %p62
      %p65 = scmp.ne.s32.totalorder %s48, %s64
      %p66 = scmp.eq.s32.totalorder %s14, 0
      %p67 = por %p65, %p66
      %s68 = ssub.s32 %s8, %s15
      %p69 = scmp.eq.s32.totalorder %s68, 0
      %s71 = sadd.s32 %s70, 1
      %s72 = scalar_select %p69, %s70, %s71
      %p75 = pneg %p69
      %p76 = scmp.eq.s32.totalorder %s8, 3
      %p77 = por %p75, %p76
      %p78 = scmp.ne.s32.totalorder %s70, %s73
      %p79 = scmp.eq.s32.totalorder %s8, 0
      %p80 = por %p78, %p79
      %p81 = scmp.ne.s32.totalorder %s70, %s73
      %p82 = scmp.eq.s32.totalorder %s13, 3
      %p83 = por %p81, %p82
      %p84 = scmp.ne.s32.totalorder %s73, %s74
      %p85 = scmp.eq.s32.totalorder %s13, 0
      %p86 = por %p84, %p85
      %p87 = scmp.ne.s32.totalorder %s73, %s74
      %p88 = scmp.eq.s32.totalorder %s14, 3
      %p89 = por %p87, %p88
      %p91 = scmp.ne.s32.totalorder %s74, %s90
      %p92 = scmp.eq.s32.totalorder %s14, 0
      %p93 = por %p91, %p92
      %p94 = scmp.le.s32.totalorder 1, %s8
      %p95 = scmp.lt.s32.totalorder %s8, 5
      %p96 = pnand %p94, %p95
      %p97 = pneg %p96
      // Predicated region
      $region9: #{tpu_custom_call.1} parent=5 // pred_check
        _
      $region10: #{tpu_custom_call.1} parent=5 // pred_check_branch
        %99 = sbr.rel (%p96) target = $region12
      $region11: #{tpu_custom_call.1} parent=5 // pred_region
        %s100 = ssub.s32 %s8, 1
      $region12: #{tpu_custom_call.1} parent=5 // pred_fallthru
        _
      %p101 = scmp.lt.s32.totalorder %s8, 4
      // Predicated region
      $region13: #{tpu_custom_call.1} parent=5 // pred_check
        %p102 = pneg %p101
      $region14: #{tpu_custom_call.1} parent=5 // pred_check_branch
        %104 = sbr.rel (%p102) target = $region16
      $region15: #{tpu_custom_call.1} parent=5 // pred_region
        // Predicated region
        $region17: #{tpu_custom_call.1} parent=15 // pred_check
          %p105 = pneg %p28
        $region18: #{tpu_custom_call.1} parent=15 // pred_check_branch
          %107 = sbr.rel (%p105) target = $region20
        $region19: #{tpu_custom_call.1} parent=15 // pred_region
          %s108 = smul.u32 4, %s8
          %s109 = ssub.s32 13, %s108
          %p110 = scmp.lt.s32.totalorder %s109, 4
          %s111 = scalar_select %p110, %s109, 4
          %s112 = smul.u32 128, %s111
          %p113 = scmp.lt.s32.totalorder %s108, 12
          %s114 = scalar_select %p113, %s108, 12
          %s115 = smul.addr %s114, 8
          %s116 = scalar_lea.vmem %s0, %s115
          %s117 = smul.u32 4, %s8
          %s118 = ssub.s32 13, %s117
          %p119 = scmp.lt.s32.totalorder %s118, 4
          %s120 = scalar_select %p119, %s118, 4
          %s121 = smul.u32 128, %s120
        $region20: #{tpu_custom_call.1} parent=15 // pred_fallthru
          _
        // Predicated region
        $region21: #{tpu_custom_call.1} parent=15 // pred_check
          %p122 = pneg %p54
        $region22: #{tpu_custom_call.1} parent=15 // pred_check_branch
          %124 = sbr.rel (%p122) target = $region24
        $region23: #{tpu_custom_call.1} parent=15 // pred_region
          %s125 = smul.u32 4, %s8
          %s126 = ssub.s32 13, %s125
          %p127 = scmp.lt.s32.totalorder %s126, 4
          %s128 = scalar_select %p127, %s126, 4
          %s129 = smul.u32 128, %s128
          %p130 = scmp.lt.s32.totalorder %s125, 12
          %s131 = scalar_select %p130, %s125, 12
          %s132 = smul.addr %s131, 8
          %s133 = scalar_lea.vmem %s1, %s132
          %s134 = smul.u32 4, %s8
          %s135 = ssub.s32 13, %s134
          %p136 = scmp.lt.s32.totalorder %s135, 4
          %s137 = scalar_select %p136, %s135, 4
          %s138 = smul.u32 128, %s137
        $region24: #{tpu_custom_call.1} parent=15 // pred_fallthru
          _
      $region16: #{tpu_custom_call.1} parent=5 // pred_fallthru
        _
      %p139 = scmp.le.s32.totalorder 1, %s8
      %p140 = scmp.lt.s32.totalorder %s8, 5
      %p141 = pnand %p139, %p140
      %p142 = pneg %p141
      // Predicated region
      $region25: #{tpu_custom_call.1} parent=5 // pred_check
        _
      $region26: #{tpu_custom_call.1} parent=5 // pred_check_branch
        %144 = sbr.rel (%p141) target = $region28
      $region27: #{tpu_custom_call.1} parent=5 // pred_region
        %s145 = ssub.s32 %s8, 1
        %s146 = smul.u32 4, %s13
        %s147 = ssub.s32 13, %s146
        %p148 = scmp.lt.s32.totalorder %s147, 4
        %s149 = scalar_select %p148, %s147, 4
        %s150 = smul.u32 128, %s149
        %p151 = scmp.lt.s32.totalorder %s146, 12
        %s152 = scalar_select %p151, %s146, 12
        %s153 = smul.addr %s152, 8
        %s154 = scalar_lea.vmem %s0, %s153
        %p155 = pneg %p34
        %p156 = pneg %p31
        %s157 = smul.u32 4, %s13
        %s158 = ssub.s32 13, %s157
        %p159 = scmp.lt.s32.totalorder %s158, 4
        %s160 = scalar_select %p159, %s158, 4
        %s161 = smul.u32 128, %s160
        %p162 = scmp.lt.s32.totalorder %s157, 12
        %s163 = scalar_select %p162, %s157, 12
        %s164 = smul.addr %s163, 8
        %s165 = scalar_lea.vmem %s1, %s164
        %p166 = pneg %p60
        %p167 = pneg %p57
        %p168 = pneg %p86
        %p169 = pneg %p83
        %s170 = sand.u32 %s73, 1
        %s171 = sand.u32 %s73, 1
        %s172 = smul.addr %s171, 32
        %s173 = scalar_lea.vmem [#allocation2], %s172
        %s174 = smul.u32 4, %s13
        %s175 = ssub.s32 13, %s174
        %p176 = scmp.lt.s32.totalorder %s175, 4
        %s177 = scalar_select %p176, %s175, 4
        %s178 = smul.u32 128, %s177
        %p179 = scmp.lt.s32.totalorder %s174, 12
        %s180 = scalar_select %p179, %s174, 12
        %s181 = smul.addr %s180, 8
        %s182 = scalar_lea.vmem %s0, %s181
        %s183 = smul.u32 4, %s13
        %s184 = ssub.s32 13, %s183
        %p185 = scmp.lt.s32.totalorder %s184, 4
        %s186 = scalar_select %p185, %s184, 4
        %s187 = smul.u32 128, %s186
        %s188 = smul.u32 4, %s13
        %s189 = ssub.s32 13, %s188
        %p190 = scmp.lt.s32.totalorder %s189, 4
        %s191 = scalar_select %p190, %s189, 4
        %s192 = smul.u32 128, %s191
        %p193 = scmp.lt.s32.totalorder %s188, 12
        %s194 = scalar_select %p193, %s188, 12
        %s195 = smul.addr %s194, 8
        %s196 = scalar_lea.vmem %s1, %s195
        %s197 = smul.u32 4, %s13
        %s198 = ssub.s32 13, %s197
        %p199 = scmp.lt.s32.totalorder %s198, 4
        %s200 = scalar_select %p199, %s198, 4
        %s201 = smul.u32 128, %s200
        %s202 = smul.u32 4, %s13
        %s203 = ssub.s32 13, %s202
        %p204 = scmp.lt.s32.totalorder %s203, 4
        %s205 = scalar_select %p204, %s203, 4
        %s206 = smul.u32 128, %s205
        %v207 = vld [vmem:[%s182] sm:$0xff]
        %v208 = vld [vmem:[%s182 + $0x8] sm:$0xff]
        %v209 = vld [vmem:[%s182 + $0x10] sm:$0xff]
        %v210 = vld [vmem:[%s182 + $0x18] sm:$0xff]
        %v211 = vld [vmem:[%s196] sm:$0xff]
        %v212 = vld [vmem:[%s196 + $0x8] sm:$0xff]
        %v213 = vld [vmem:[%s196 + $0x10] sm:$0xff]
        %v214 = vld [vmem:[%s196 + $0x18] sm:$0xff]
        %v215 = vand.u32 2147483647, %v207
        %v216 = vand.u32 2147483647, %v208
        %v217 = vand.u32 2147483647, %v209
        %v218 = vand.u32 2147483647, %v210
        %v219 = vsub.f32 0.0, %v215
        %v220 = vsub.f32 0.0, %v216
        %v221 = vsub.f32 0.0, %v217
        %v222 = vsub.f32 0.0, %v218
        %v223 = vmul.f32 %v219, 1.442695
        %v224 = vpow.pop %v223
        %v225 = vmul.f32 %v220, 1.442695
        %v226 = vpow.pop %v225
        %v227 = vmul.f32 %v221, 1.442695
        %v228 = vpow.pop %v227
        %v229 = vmul.f32 %v222, 1.442695
        %v230 = vpow.pop %v229
        %v231 = vmul.f32 %v207, 0.5
        %v232 = vmul.f32 %v208, 0.5
        %v233 = vmul.f32 %v209, 0.5
        %v234 = vmul.f32 %v210, 0.5
        %v235 = vtanh.pop %v231
        %v236 = vtanh.pop %v232
        %v237 = vtanh.pop %v233
        %v238 = vtanh.pop %v234
        %v239 = vmul.f32 %v235, 0.5
        %v240 = vmul.f32 %v236, 0.5
        %v241 = vmul.f32 %v237, 0.5
        %v242 = vmul.f32 %v238, 0.5
        %v243 = vadd.f32 %v239, 0.5
        %v244 = vadd.f32 %v240, 0.5
        %v245 = vadd.f32 %v241, 0.5
        %v246 = vadd.f32 %v242, 0.5
        %v247 = vsub.f32 %v243, %v211
        %v248 = vsub.f32 %v244, %v212
        %v249 = vsub.f32 %v245, %v213
        %v250 = vsub.f32 %v246, %v214
        %v251 = vand.u32 2147483647, %v247
        %v252 = vand.u32 2147483647, %v248
        %v253 = vand.u32 2147483647, %v249
        %v254 = vand.u32 2147483647, %v250
        %v255 = vmul.f32 %v251, %v251
        %v256 = vmul.f32 %v252, %v252
        %v257 = vmul.f32 %v253, %v253
        %v258 = vmul.f32 %v254, %v254
        %vm259 = vcmp.gt.f32.partialorder %v211, 0.0
        %vm260 = vcmp.gt.f32.partialorder %v212, 0.0
        %vm261 = vcmp.gt.f32.partialorder %v213, 0.0
        %vm262 = vcmp.gt.f32.partialorder %v214, 0.0
        %v263 = vmul.f32 %v255, 0.75
        %v264 = vmul.f32 %v256, 0.75
        %v265 = vmul.f32 %v257, 0.75
        %v266 = vmul.f32 %v258, 0.75
        %v267 = vsel %vm259, %v211, %v263
        %v268 = vsel %vm260, %v212, %v264
        %v269 = vsel %vm261, %v213, %v265
        %v270 = vsel %vm262, %v214, %v266
        %v271 = vmax.f32 %v207, 0.0
        %v272 = vmax.f32 %v208, 0.0
        %v273 = vmax.f32 %v209, 0.0
        %v274 = vmax.f32 %v210, 0.0
        %v275 = vmul.f32 %v207, %v211
        %v276 = vmul.f32 %v208, %v212
        %v277 = vmul.f32 %v209, %v213
        %v278 = vmul.f32 %v210, %v214
        %v279 = vsub.f32 %v271, %v275
        %v280 = vsub.f32 %v272, %v276
        %v281 = vsub.f32 %v273, %v277
        %v282 = vsub.f32 %v274, %v278
        %v283 = vadd.f32 %v224, 1.0
        %v284 = vlog2.pop %v283
        %v285 = vmul.f32 %v284, 0.6931472
        %v286 = vmul.f32 -0.5, %v224
        %v287 = vadd.f32 %v286, 1.0
        %v288 = vmul.f32 %v287, %v224
        %v289 = vand.u32 2147483647, %v224
        %vm290 = vcmp.lt.f32.partialorder %v289, 0.0004427343
        %v291 = vsel %vm290, %v288, %v285
        %v292 = vadd.f32 %v226, 1.0
        %v293 = vlog2.pop %v292
        %v294 = vmul.f32 %v293, 0.6931472
        %v295 = vmul.f32 -0.5, %v226
        %v296 = vadd.f32 %v295, 1.0
        %v297 = vmul.f32 %v296, %v226
        %v298 = vand.u32 2147483647, %v226
        %vm299 = vcmp.lt.f32.partialorder %v298, 0.0004427343
        %v300 = vsel %vm299, %v297, %v294
        %v301 = vadd.f32 %v228, 1.0
        %v302 = vlog2.pop %v301
        %v303 = vmul.f32 %v302, 0.6931472
        %v304 = vmul.f32 -0.5, %v228
        %v305 = vadd.f32 %v304, 1.0
        %v306 = vmul.f32 %v305, %v228
        %v307 = vand.u32 2147483647, %v228
        %vm308 = vcmp.lt.f32.partialorder %v307, 0.0004427343
        %v309 = vsel %vm308, %v306, %v303
        %v310 = vadd.f32 %v230, 1.0
        %v311 = vlog2.pop %v310
        %v312 = vmul.f32 %v311, 0.6931472
        %v313 = vmul.f32 -0.5, %v230
        %v314 = vadd.f32 %v313, 1.0
        %v315 = vmul.f32 %v314, %v230
        %v316 = vand.u32 2147483647, %v230
        %vm317 = vcmp.lt.f32.partialorder %v316, 0.0004427343
        %v318 = vsel %vm317, %v315, %v312
        %v319 = vadd.f32 %v279, %v291
        %v320 = vadd.f32 %v280, %v300
        %v321 = vadd.f32 %v281, %v309
        %v322 = vadd.f32 %v282, %v318
        %v323 = vmul.f32 %v319, %v267
        %v324 = vmul.f32 %v320, %v268
        %v325 = vmul.f32 %v321, %v269
        %v326 = vmul.f32 %v322, %v270
        %vm327 = vcmask 654336
        %328 = vst.msk [vmem:[%s173] sm:$0xff] %vm327, %v323
        %329 = vst.msk [vmem:[%s173 + $0x8] sm:$0xff] %vm327, %v324
        %330 = vst.msk [vmem:[%s173 + $0x10] sm:$0xff] %vm327, %v325
        %331 = vst.msk [vmem:[%s173 + $0x18] sm:$0xff] %vm327, %v326
        %s332 = sand.u32 %s73, 1
        %s333 = sand.u32 %s73, 1
        %s334 = smul.addr %s333, 32
        %s335 = scalar_lea.vmem [#allocation2], %s334
        // Predicated region
        $region29: #{tpu_custom_call.1} parent=27 // pred_check
          %p336 = pneg %p83
        $region30: #{tpu_custom_call.1} parent=27 // pred_check_branch
          %338 = sbr.rel (%p336) target = $region32
        $region31: #{tpu_custom_call.1} parent=27 // pred_region
          %s339 = smul.u32 4, %s13
          %s340 = ssub.s32 13, %s339
          %p341 = scmp.lt.s32.totalorder %s340, 4
          %s342 = scalar_select %p341, %s340, 4
          %s343 = smul.u32 128, %s342
          %p344 = scmp.ne.s32.totalorder 0, %s343
          %s345 = smul.addr %s339, 8
          %s346 = scalar_lea.vmem %s2, %s345
          // Predicated region
          $region33: #{tpu_custom_call.1} parent=31 // pred_check
            %p347 = pneg %p344
          $region34: #{tpu_custom_call.1} parent=31 // pred_check_branch
            %349 = sbr.rel (%p347) target = $region36
          $region35: #{tpu_custom_call.1} parent=31 // pred_region
            // Predicated region
            $region37: #{tpu_custom_call.1} parent=35 // pred_check
              _
            $region38: #{tpu_custom_call.1} parent=35 // pred_check_branch
              %351 = sbr.rel (0) target = $region40
            $region39: #{tpu_custom_call.1} parent=35 // pred_region
              // Predicated region
              $region59: #{tpu_custom_call.1} parent=39 // pred_check
                _
              $region60: #{tpu_custom_call.1} parent=39 // pred_check_branch
                %406 = sbr.rel (0) target = $region62
              $region61: #{tpu_custom_call.1} parent=39 // pred_region
                %s407 = sshrl.u32 %s342, 2
                // While loop
                $region63: #{tpu_custom_call.1} parent=61 // loop_pre_header
                  _
                $region64: #{tpu_custom_call.1} parent=61 // loop_header
                  %s409 = sphi 0, %s411
                  %p410 = scmp.ge.s32.totalorder %s409, %s407
                  %s414 = sphi 0, %s427
                  %s415 = sphi %s335, %s430
                  %s416 = sphi %s346, %s431
                $region65: #{tpu_custom_call.1} parent=61 // loop_header_branch
                  %413 = sbr.rel (%p410) target = $region69
                $region66: #{tpu_custom_call.1} parent=61 // loop_body
                  %v417 = vld [vmem:[%s415] sm:$0xff]
                  %418 = vst [vmem:[%s416] sm:$0xff] %v417
                  %v419 = vld [vmem:[%s415 + $0x8] sm:$0xff]
                  %420 = vst [vmem:[%s416 + $0x8] sm:$0xff] %v419
                  %v421 = vld [vmem:[%s415 + $0x10] sm:$0xff]
                  %422 = vst [vmem:[%s416 + $0x10] sm:$0xff] %v421
                  %v423 = vld [vmem:[%s415 + $0x18] sm:$0xff]
                  %424 = vst [vmem:[%s416 + $0x18] sm:$0xff] %v423
                  %s425 = sadd.s32 1, %s414
                  %p426 = scmp.ge.s32.totalorder %s425, %s407
                  %s427 = scalar_select %p426, 0, %s425
                  %s428 = smul.u32 %s427, 32
                  %s429 = smul.u32 %s427, 32
                  %s430 = scalar_lea.vmem %s335, %s428 [#allocation2]
                  %s431 = scalar_lea.vmem %s346, %s429
                $region67: #{tpu_custom_call.1} parent=61 // loop_footer
                  %s411 = sadd.s32 %s409, 1
                $region68: #{tpu_custom_call.1} parent=61 // loop_footer_branch
                  %408 = sbr.rel target = $region64
                $region69: #{tpu_custom_call.1} parent=61 // loop_exit
                  _
                %s432 = sshrl.u32 %s342, 2
                %s433 = sand.u32 %s342, 3
                %s434 = smul.u32 %s432, 4
                %s435 = smul.u32 8, %s434
                %s436 = scalar_lea.vmem %s335, %s435 [#allocation2]
                %s437 = smul.u32 8, %s434
                %s438 = scalar_lea.vmem %s346, %s437
                // While loop
                $region70: #{tpu_custom_call.1} parent=61 // loop_pre_header
                  _
                $region71: #{tpu_custom_call.1} parent=61 // loop_header
                  %s440 = sphi 0, %s442
                  %p441 = scmp.ge.s32.totalorder %s440, %s433
                  %s445 = sphi 0, %s452
                  %s446 = sphi %s436, %s455
                  %s447 = sphi %s438, %s456
                $region72: #{tpu_custom_call.1} parent=61 // loop_header_branch
                  %444 = sbr.rel (%p441) target = $region76
                $region73: #{tpu_custom_call.1} parent=61 // loop_body
                  %v448 = vld [vmem:[%s446] sm:$0xff]
                  %449 = vst [vmem:[%s447] sm:$0xff] %v448
                  %s450 = sadd.s32 1, %s445
                  %p451 = scmp.ge.s32.totalorder %s450, %s433
                  %s452 = scalar_select %p451, 0, %s450
                  %s453 = smul.u32 %s452, 8
                  %s454 = smul.u32 %s452, 8
                  %s455 = scalar_lea.vmem %s436, %s453 [#allocation2]
                  %s456 = scalar_lea.vmem %s438, %s454
                $region74: #{tpu_custom_call.1} parent=61 // loop_footer
                  %s442 = sadd.s32 %s440, 1
                $region75: #{tpu_custom_call.1} parent=61 // loop_footer_branch
                  %439 = sbr.rel target = $region71
                $region76: #{tpu_custom_call.1} parent=61 // loop_exit
                  _
              $region62: #{tpu_custom_call.1} parent=39 // pred_fallthru
                _
              // Predicated region
              $region77: #{tpu_custom_call.1} parent=39 // pred_check
                _
              $region78: #{tpu_custom_call.1} parent=39 // pred_check_branch
                %458 = sbr.rel target = $region80
              $region79: #{tpu_custom_call.1} parent=39 // pred_region
                _
              $region80: #{tpu_custom_call.1} parent=39 // pred_fallthru
                _
            $region40: #{tpu_custom_call.1} parent=35 // pred_fallthru
              _
            // Predicated region
            $region41: #{tpu_custom_call.1} parent=35 // pred_check
              _
            $region42: #{tpu_custom_call.1} parent=35 // pred_check_branch
              %353 = sbr.rel target = $region44
            $region43: #{tpu_custom_call.1} parent=35 // pred_region
              %s355 = sshrl.u32 %s342, 2
              // While loop
              $region45: #{tpu_custom_call.1} parent=43 // loop_pre_header
                _
              $region46: #{tpu_custom_call.1} parent=43 // loop_header
                %s357 = sphi 0, %s359
                %p358 = scmp.ge.s32.totalorder %s357, %s355
                %s362 = sphi 0, %s375
                %s363 = sphi %s335, %s378
                %s364 = sphi %s346, %s379
              $region47: #{tpu_custom_call.1} parent=43 // loop_header_branch
                %361 = sbr.rel (%p358) target = $region51
              $region48: #{tpu_custom_call.1} parent=43 // loop_body
                %v365 = vld [vmem:[%s363] sm:$0xff]
                %366 = vst [vmem:[%s364] sm:$0xff] %v365
                %v367 = vld [vmem:[%s363 + $0x8] sm:$0xff]
                %368 = vst [vmem:[%s364 + $0x8] sm:$0xff] %v367
                %v369 = vld [vmem:[%s363 + $0x10] sm:$0xff]
                %370 = vst [vmem:[%s364 + $0x10] sm:$0xff] %v369
                %v371 = vld [vmem:[%s363 + $0x18] sm:$0xff]
                %372 = vst [vmem:[%s364 + $0x18] sm:$0xff] %v371
                %s373 = sadd.s32 1, %s362
                %p374 = scmp.ge.s32.totalorder %s373, %s355
                %s375 = scalar_select %p374, 0, %s373
                %s376 = smul.u32 %s375, 32
                %s377 = smul.u32 %s375, 32
                %s378 = scalar_lea.vmem %s335, %s376 [#allocation2]
                %s379 = scalar_lea.vmem %s346, %s377
              $region49: #{tpu_custom_call.1} parent=43 // loop_footer
                %s359 = sadd.s32 %s357, 1
              $region50: #{tpu_custom_call.1} parent=43 // loop_footer_branch
                %356 = sbr.rel target = $region46
              $region51: #{tpu_custom_call.1} parent=43 // loop_exit
                _
              %s380 = sshrl.u32 %s342, 2
              %s381 = sand.u32 %s342, 3
              %s382 = smul.u32 %s380, 4
              %s383 = smul.u32 8, %s382
              %s384 = scalar_lea.vmem %s335, %s383 [#allocation2]
              %s385 = smul.u32 8, %s382
              %s386 = scalar_lea.vmem %s346, %s385
              // While loop
              $region52: #{tpu_custom_call.1} parent=43 // loop_pre_header
                _
              $region53: #{tpu_custom_call.1} parent=43 // loop_header
                %s388 = sphi 0, %s390
                %p389 = scmp.ge.s32.totalorder %s388, %s381
                %s393 = sphi 0, %s400
                %s394 = sphi %s384, %s403
                %s395 = sphi %s386, %s404
              $region54: #{tpu_custom_call.1} parent=43 // loop_header_branch
                %392 = sbr.rel (%p389) target = $region58
              $region55: #{tpu_custom_call.1} parent=43 // loop_body
                %v396 = vld [vmem:[%s394] sm:$0xff]
                %397 = vst [vmem:[%s395] sm:$0xff] %v396
                %s398 = sadd.s32 1, %s393
                %p399 = scmp.ge.s32.totalorder %s398, %s381
                %s400 = scalar_select %p399, 0, %s398
                %s401 = smul.u32 %s400, 8
                %s402 = smul.u32 %s400, 8
                %s403 = scalar_lea.vmem %s384, %s401 [#allocation2]
                %s404 = scalar_lea.vmem %s386, %s402
              $region56: #{tpu_custom_call.1} parent=43 // loop_footer
                %s390 = sadd.s32 %s388, 1
              $region57: #{tpu_custom_call.1} parent=43 // loop_footer_branch
                %387 = sbr.rel target = $region53
              $region58: #{tpu_custom_call.1} parent=43 // loop_exit
                _
            $region44: #{tpu_custom_call.1} parent=35 // pred_fallthru
              _
          $region36: #{tpu_custom_call.1} parent=31 // pred_fallthru
            _
          %459 = vnop
        $region32: #{tpu_custom_call.1} parent=27 // pred_fallthru
          _
      $region28: #{tpu_custom_call.1} parent=5 // pred_fallthru
        _
      %p460 = scmp.le.s32.totalorder 2, %s8
      // Predicated region
      $region81: #{tpu_custom_call.1} parent=5 // pred_check
        %p461 = pneg %p460
      $region82: #{tpu_custom_call.1} parent=5 // pred_check_branch
        %463 = sbr.rel (%p461) target = $region84
      $region83: #{tpu_custom_call.1} parent=5 // pred_region
        %s464 = ssub.s32 %s8, 2
        // Predicated region
        $region85: #{tpu_custom_call.1} parent=83 // pred_check
          %p465 = pneg %p89
        $region86: #{tpu_custom_call.1} parent=83 // pred_check_branch
          %467 = sbr.rel (%p465) target = $region88
        $region87: #{tpu_custom_call.1} parent=83 // pred_region
          %s468 = sand.u32 %s74, 1
          %s469 = sand.u32 %s74, 1
          %s470 = smul.addr %s469, 32
          %s471 = scalar_lea.vmem [#allocation2], %s470
        $region88: #{tpu_custom_call.1} parent=83 // pred_fallthru
          _
      $region84: #{tpu_custom_call.1} parent=5 // pred_fallthru
        _
    $region6: #{tpu_custom_call.1} parent=1 // loop_footer
      %s12 = sadd.s32 1, %s8
    $region7: #{tpu_custom_call.1} parent=1 // loop_footer_branch
      %7 = sbr.rel target = $region3
    $region8: #{tpu_custom_call.1} parent=1 // loop_exit
      _

</llo_original>
